<compile_context>
chip_gen: v7x
topology: tpu7x:2x2x1
jax: 0.10.0
libtpu: 0.0.40
codegen_flags: <defaults>
</compile_context>

<pallas_src>
import functools

import jax
import jax.numpy as jnp
from jax.experimental import pallas as pl
from jax.experimental.pallas import tpu as pltpu


def _round_up(x, m):
    return (x + m - 1) // m * m


def _sigmoid(t):
    # sigmoid(t) = 0.5 * tanh(0.5 * t) + 0.5 : one EUP transcendental instead
    # of exp + reciprocal (cuts the EUP op count ~40% in this kernel).
    return 0.5 * jnp.tanh(0.5 * t) + 0.5


def _gru_gate_kernel(x_ref, y_ref, wy_ref, ux_ref, ug_ref, bg_ref, o_ref, *, d):
    """One row tile.  wy = [Wr^T | Wz^T | Wg^T] (d cols each), ux = [Ur^T | Uz^T]."""
    x = x_ref[...]
    y = y_ref[...]
    xf = x.astype(jnp.float32)
    bg = bg_ref[...].astype(jnp.float32)            # (1, d): broadcasts over rows

    # z gate first so the output accumulator starts early and fewer f32
    # [bm, d] slabs are live at once (smaller VMEM working set).
    z = _sigmoid(
        jnp.dot(y, wy_ref[:, d:2 * d], preferred_element_type=jnp.float32)
        + jnp.dot(x, ux_ref[:, d:2 * d], preferred_element_type=jnp.float32)
        - bg)
    acc = (1.0 - z) * xf

    # r gate, consumed immediately by (r * x).
    r = _sigmoid(
        jnp.dot(y, wy_ref[:, :d], preferred_element_type=jnp.float32)
        + jnp.dot(x, ux_ref[:, :d], preferred_element_type=jnp.float32))
    rx = (r * xf).astype(ug_ref.dtype)

    # Candidate h = tanh(y @ Wg + (r*x) @ Ug).
    h = jnp.tanh(
        jnp.dot(y, wy_ref[:, 2 * d:], preferred_element_type=jnp.float32)
        + jnp.dot(rx, ug_ref[...], preferred_element_type=jnp.float32))

    o_ref[...] = (acc + z * h).astype(o_ref.dtype)


def prepare_gru_gate_params(params, compute_dtype=None):
    """One-time (parameter-load-time) weight preparation.

    params: PyTorch-layout weights Wr, Ur, Wz, Uz, Wg, Ug as [out, in] = [D, D]
    and bg as [D].  Returns fused, transposed, lane-padded operands:
      wy [Dp, 3*Dp] = [Wr^T|Wz^T|Wg^T], ux [Dp, 2*Dp] = [Ur^T|Uz^T], ug [Dp, Dp],
      bg [1, Dp], with Dp = round_up(D, 128).
    compute_dtype=jnp.bfloat16 is the opt-in fast-MXU operand path (changes
    matmul numerics; accumulation stays f32 in the kernel).
    """
    wr = jnp.asarray(params["Wr"])
    D = wr.shape[0]
    Dp = _round_up(max(D, 128), 128)
    if compute_dtype is None:
        compute_dtype = wr.dtype

    def prep(w):  # PyTorch (out, in) -> padded (in_p, out_p) so kernel does v @ W
        wt = jnp.asarray(w).T.astype(compute_dtype)
        return jnp.pad(wt, ((0, Dp - D), (0, Dp - D)))

    wy = jnp.concatenate(
        [prep(params["Wr"]), prep(params["Wz"]), prep(params["Wg"])], axis=1)
    ux = jnp.concatenate([prep(params["Ur"]), prep(params["Uz"])], axis=1)
    ug = prep(params["Ug"])
    bg = jnp.pad(jnp.asarray(params["bg"]).astype(jnp.float32),
                 (0, Dp - D)).reshape(1, Dp)
    return {"wy": wy, "ux": ux, "ug": ug, "bg": bg}


def _vmem_cap_bytes():
    try:
        return int(pltpu.get_tpu_info().vmem_capacity_bytes)
    except Exception:
        return 64 * 1024 * 1024   # conservative fallback: v7x per-TensorCore


@functools.partial(jax.jit, static_argnames=("block_m",))
def gru_gating_unit(x, y, prepared, block_m=None):
    """x, y: [..., D].  prepared: output of prepare_gru_gate_params().
    Returns the GRU gate output with the same shape/dtype as x."""
    orig_shape = x.shape
    D = orig_shape[-1]
    wy, ux, ug, bg = prepared["wy"], prepared["ux"], prepared["ug"], prepared["bg"]
    Dp = wy.shape[0]
    compute_dtype = wy.dtype

    x2 = x.reshape(-1, D)
    y2 = y.reshape(-1, D)
    M = x2.shape[0]

    # Lane-pad the feature dim only when needed (zero columns are required for
    # a correct contraction); the row dim is never padded -- the grid handles
    # the ragged tail with masked writes.
    def prep_act(a):
        a = a.astype(compute_dtype)
        if D != Dp:
            a = jnp.pad(a, ((0, 0), (0, Dp - D)))
        return a

    xp = prep_act(x2)
    yp = prep_act(y2)

    # Row tile: multiple of 16 sublanes (covers f32 and bf16 packing).  Default
    # targets (a) 256/512 rows max (VMEM, esp. v7x's 64 MiB) and (b) >= ~8 grid
    # steps so both v7x TensorCores get several pipelined steps each.
    if block_m is None:
        base = 256 if Dp >= 1024 else 512
        block_m = min(base, max(16, _round_up(pl.cdiv(M, 8), 16)))
    block_m = max(16, _round_up(block_m, 16))
    block_m = min(block_m, _round_up(max(M, 16), 16))
    grid_m = pl.cdiv(M, block_m)

    w_item = jnp.dtype(compute_dtype).itemsize
    out_item = jnp.dtype(x.dtype).itemsize

    # VMEM budget: weights single-buffered (pl.Buffered(1)), activations and
    # output double-buffered, ~6 live f32 [block_m, Dp] temporaries.
    weight_bytes = (wy.size + ux.size + ug.size) * w_item + bg.size * 4
    act_bytes = 2 * 2 * block_m * Dp * w_item
    out_bytes = 2 * block_m * Dp * out_item
    tmp_bytes = 6 * block_m * Dp * 4
    vmem_limit = int(1.2 * (weight_bytes + act_bytes + out_bytes + tmp_bytes))
    vmem_limit = max(vmem_limit, 32 * 1024 * 1024)
    vmem_limit = min(vmem_limit, int(0.85 * _vmem_cap_bytes()))

    cost = pl.CostEstimate(
        flops=12 * M * Dp * Dp,              # 6 DxD matmuls, 2*M*N*K each
        transcendentals=3 * M * Dp,          # 3 tanh per output element
        bytes_accessed=int((xp.size + yp.size) * w_item
                           + M * Dp * out_item + weight_bytes),
    )

    row_spec = pl.BlockSpec((block_m, Dp), lambda i: (i, 0))

    def const_spec(shape):
        # Grid-invariant operand: one resident VMEM buffer, no double-buffering.
        return pl.BlockSpec(shape, lambda i: (0, 0), pipeline_mode=pl.Buffered(1))

    out2 = pl.pallas_call(
        functools.partial(_gru_gate_kernel, d=Dp),
        out_shape=jax.ShapeDtypeStruct((M, Dp), x.dtype),
        grid_spec=pltpu.PrefetchScalarGridSpec(
            num_scalar_prefetch=0,
            grid=(grid_m,),
            in_specs=[row_spec, row_spec,
                      const_spec((Dp, 3 * Dp)),
                      const_spec((Dp, 2 * Dp)),
                      const_spec((Dp, Dp)),
                      const_spec((1, Dp))],
            out_specs=row_spec,
        ),
        compiler_params=pltpu.CompilerParams(
            dimension_semantics=("parallel",),
            vmem_limit_bytes=vmem_limit),
        cost_estimate=cost,
    )(xp, yp, wy, ux, ug, bg)

    return out2[:, :D].reshape(orig_shape)


def _reference(x, y, params):
    def lin(v, w):  # PyTorch Linear(bias=False): v @ W.T
        return jnp.einsum("...i,oi->...o", v, w)
    r = jax.nn.sigmoid(lin(y, params["Wr"]) + lin(x, params["Ur"]))
    z = jax.nn.sigmoid(lin(y, params["Wz"]) + lin(x, params["Uz"]) - params["bg"])
    h = jnp.tanh(lin(y, params["Wg"]) + lin(r * x, params["Ug"]))
    return (1.0 - z) * x + z * h


if __name__ == "__main__":
    key = jax.random.PRNGKey(0)
    batch, seq, D = 2, 8, 32
    bg_init = 2.0

    (k_x, k_y, k_wr, k_ur, k_wz, k_uz, k_wg, k_ug, k_x2, k_y2) = jax.random.split(key, 10)
    x = jax.random.normal(k_x, (batch, seq, D), dtype=jnp.float32)
    y = jax.random.normal(k_y, (batch, seq, D), dtype=jnp.float32)

    scale = 1.0 / jnp.sqrt(D)   # deterministic synthetic init (PyTorch [out, in] layout)
    params = {
        "Wr": jax.random.uniform(k_wr, (D, D), jnp.float32, -scale, scale),
        "Ur": jax.random.uniform(k_ur, (D, D), jnp.float32, -scale, scale),
        "Wz": jax.random.uniform(k_wz, (D, D), jnp.float32, -scale, scale),
        "Uz": jax.random.uniform(k_uz, (D, D), jnp.float32, -scale, scale),
        "Wg": jax.random.uniform(k_wg, (D, D), jnp.float32, -scale, scale),
        "Ug": jax.random.uniform(k_ug, (D, D), jnp.float32, -scale, scale),
        "bg": jnp.full((D,), bg_init, dtype=jnp.float32),
    }

    # Weight prep happens ONCE here (parameter-load time), not per call.
    prepared = prepare_gru_gate_params(params)

    # Case 1: small single-tile call.
    out = jax.block_until_ready(gru_gating_unit(x, y, prepared))
    ref = _reference(x, y, params)
    assert out.shape == x.shape and out.dtype == x.dtype
    assert jnp.allclose(out, ref, atol=1e-4, rtol=1e-4)

    # Case 2: ragged row grid (M=80, block_m=32 -> 3 steps, masked tail writes).
    xb = jax.random.normal(k_x2, (batch, 40, D), dtype=jnp.float32)
    yb = jax.random.normal(k_y2, (batch, 40, D), dtype=jnp.float32)
    out_b = jax.block_until_ready(gru_gating_unit(xb, yb, prepared, block_m=32))
    ref_b = _reference(xb, yb, params)
    assert out_b.shape == xb.shape
    assert jnp.allclose(out_b, ref_b, atol=1e-4, rtol=1e-4)

    # Case 3: opt-in bf16 operand path (different numerics -> loose tolerance).
    prepared_bf16 = prepare_gru_gate_params(params, compute_dtype=jnp.bfloat16)
    out_bf16 = jax.block_until_ready(gru_gating_unit(x, y, prepared_bf16))
    assert out_bf16.shape == x.shape and bool(jnp.all(jnp.isfinite(out_bf16)))
    assert jnp.allclose(out_bf16, ref, atol=1e-1, rtol=1e-1)

    print("KERNEL_OK")
</pallas_src>

<mosaic_0001>
module attributes {stable_mosaic.version = 11 : i64} {
  func.func @_gru_gate_kernel(%arg0: i32, %arg1: memref<16x128xf32, #tpu.memory_space<vmem>>, %arg2: memref<16x128xf32, #tpu.memory_space<vmem>>, %arg3: memref<128x384xf32, #tpu.memory_space<vmem>>, %arg4: memref<128x256xf32, #tpu.memory_space<vmem>>, %arg5: memref<128x128xf32, #tpu.memory_space<vmem>>, %arg6: memref<1x128xf32, #tpu.memory_space<vmem>>, %arg7: memref<16x128xf32, #tpu.memory_space<vmem>>) attributes {dimension_semantics = [#tpu.dimension_semantics<parallel>], iteration_bounds = array<i64: 1>, scalar_prefetch = 0 : i64, scratch_operands = 0 : i64, tpu.core_type = #tpu.core_type<tc>, window_params = [{transform_indices = @transform_0, window_bounds = array<i64: 16, 128>}, {transform_indices = @transform_1, window_bounds = array<i64: 16, 128>}, {pipeline_mode = #tpu.pipeline_mode<synchronous>, transform_indices = @transform_2, window_bounds = array<i64: 128, 384>}, {pipeline_mode = #tpu.pipeline_mode<synchronous>, transform_indices = @transform_3, window_bounds = array<i64: 128, 256>}, {pipeline_mode = #tpu.pipeline_mode<synchronous>, transform_indices = @transform_4, window_bounds = array<i64: 128, 128>}, {pipeline_mode = #tpu.pipeline_mode<synchronous>, transform_indices = @transform_5, window_bounds = array<i64: 1, 128>}, {transform_indices = @transform_6, window_bounds = array<i64: 16, 128>}]} {
    %c0 = arith.constant 0 : index
    %c0_0 = arith.constant 0 : index
    %0 = vector.load %arg1[%c0, %c0_0] : memref<16x128xf32, #tpu.memory_space<vmem>>, vector<16x128xf32>
    %c0_1 = arith.constant 0 : index
    %c0_2 = arith.constant 0 : index
    %1 = vector.load %arg2[%c0_1, %c0_2] : memref<16x128xf32, #tpu.memory_space<vmem>>, vector<16x128xf32>
    %c0_3 = arith.constant 0 : index
    %c0_4 = arith.constant 0 : index
    %2 = vector.load %arg6[%c0_3, %c0_4] : memref<1x128xf32, #tpu.memory_space<vmem>>, vector<1x128xf32>
    %c0_5 = arith.constant 0 : index
    %c128 = arith.constant 128 : index
    %3 = vector.load %arg3[%c0_5, %c128] : memref<128x384xf32, #tpu.memory_space<vmem>>, vector<128x128xf32>
    %cst = arith.constant dense<0.000000e+00> : vector<16x128xf32>
    %4 = tpu.matmul %1, %3, %cst {dimension_numbers = #tpu.dot_dimension_numbers<[1], [0], [0], [1], [0, 0, 1, 1], [], []>} : vector<16x128xf32>, vector<128x128xf32>, vector<16x128xf32> -> vector<16x128xf32>
    %c0_6 = arith.constant 0 : index
    %c128_7 = arith.constant 128 : index
    %5 = vector.load %arg4[%c0_6, %c128_7] : memref<128x256xf32, #tpu.memory_space<vmem>>, vector<128x128xf32>
    %cst_8 = arith.constant dense<0.000000e+00> : vector<16x128xf32>
    %6 = tpu.matmul %0, %5, %cst_8 {dimension_numbers = #tpu.dot_dimension_numbers<[1], [0], [0], [1], [0, 0, 1, 1], [], []>} : vector<16x128xf32>, vector<128x128xf32>, vector<16x128xf32> -> vector<16x128xf32>
    %7 = arith.addf %4, %6 : vector<16x128xf32>
    %8 = vector.broadcast %2 : vector<1x128xf32> to vector<16x128xf32>
    %9 = arith.subf %7, %8 : vector<16x128xf32>
    %cst_9 = arith.constant 5.000000e-01 : f32
    %10 = vector.broadcast %cst_9 : f32 to vector<16x128xf32>
    %11 = arith.mulf %10, %9 : vector<16x128xf32>
    %12 = math.tanh %11 : vector<16x128xf32>
    %cst_10 = arith.constant 5.000000e-01 : f32
    %13 = vector.broadcast %cst_10 : f32 to vector<16x128xf32>
    %14 = arith.mulf %13, %12 : vector<16x128xf32>
    %cst_11 = arith.constant 5.000000e-01 : f32
    %15 = vector.broadcast %cst_11 : f32 to vector<16x128xf32>
    %16 = arith.addf %14, %15 : vector<16x128xf32>
    %cst_12 = arith.constant 1.000000e+00 : f32
    %17 = vector.broadcast %cst_12 : f32 to vector<16x128xf32>
    %18 = arith.subf %17, %16 : vector<16x128xf32>
    %19 = arith.mulf %18, %0 : vector<16x128xf32>
    %c0_13 = arith.constant 0 : index
    %c0_14 = arith.constant 0 : index
    %20 = vector.load %arg3[%c0_13, %c0_14] : memref<128x384xf32, #tpu.memory_space<vmem>>, vector<128x128xf32>
    %cst_15 = arith.constant dense<0.000000e+00> : vector<16x128xf32>
    %21 = tpu.matmul %1, %20, %cst_15 {dimension_numbers = #tpu.dot_dimension_numbers<[1], [0], [0], [1], [0, 0, 1, 1], [], []>} : vector<16x128xf32>, vector<128x128xf32>, vector<16x128xf32> -> vector<16x128xf32>
    %c0_16 = arith.constant 0 : index
    %c0_17 = arith.constant 0 : index
    %22 = vector.load %arg4[%c0_16, %c0_17] : memref<128x256xf32, #tpu.memory_space<vmem>>, vector<128x128xf32>
    %cst_18 = arith.constant dense<0.000000e+00> : vector<16x128xf32>
    %23 = tpu.matmul %0, %22, %cst_18 {dimension_numbers = #tpu.dot_dimension_numbers<[1], [0], [0], [1], [0, 0, 1, 1], [], []>} : vector<16x128xf32>, vector<128x128xf32>, vector<16x128xf32> -> vector<16x128xf32>
    %24 = arith.addf %21, %23 : vector<16x128xf32>
    %cst_19 = arith.constant 5.000000e-01 : f32
    %25 = vector.broadcast %cst_19 : f32 to vector<16x128xf32>
    %26 = arith.mulf %25, %24 : vector<16x128xf32>
    %27 = math.tanh %26 : vector<16x128xf32>
    %cst_20 = arith.constant 5.000000e-01 : f32
    %28 = vector.broadcast %cst_20 : f32 to vector<16x128xf32>
    %29 = arith.mulf %28, %27 : vector<16x128xf32>
    %cst_21 = arith.constant 5.000000e-01 : f32
    %30 = vector.broadcast %cst_21 : f32 to vector<16x128xf32>
    %31 = arith.addf %29, %30 : vector<16x128xf32>
    %32 = arith.mulf %31, %0 : vector<16x128xf32>
    %c0_22 = arith.constant 0 : index
    %c256 = arith.constant 256 : index
    %33 = vector.load %arg3[%c0_22, %c256] : memref<128x384xf32, #tpu.memory_space<vmem>>, vector<128x128xf32>
    %cst_23 = arith.constant dense<0.000000e+00> : vector<16x128xf32>
    %34 = tpu.matmul %1, %33, %cst_23 {dimension_numbers = #tpu.dot_dimension_numbers<[1], [0], [0], [1], [0, 0, 1, 1], [], []>} : vector<16x128xf32>, vector<128x128xf32>, vector<16x128xf32> -> vector<16x128xf32>
    %c0_24 = arith.constant 0 : index
    %c0_25 = arith.constant 0 : index
    %35 = vector.load %arg5[%c0_24, %c0_25] : memref<128x128xf32, #tpu.memory_space<vmem>>, vector<128x128xf32>
    %cst_26 = arith.constant dense<0.000000e+00> : vector<16x128xf32>
    %36 = tpu.matmul %32, %35, %cst_26 {dimension_numbers = #tpu.dot_dimension_numbers<[1], [0], [0], [1], [0, 0, 1, 1], [], []>} : vector<16x128xf32>, vector<128x128xf32>, vector<16x128xf32> -> vector<16x128xf32>
    %37 = arith.addf %34, %36 : vector<16x128xf32>
    %38 = math.tanh %37 : vector<16x128xf32>
    %39 = arith.mulf %16, %38 : vector<16x128xf32>
    %40 = arith.addf %19, %39 : vector<16x128xf32>
    %c0_27 = arith.constant 0 : index
    %c0_28 = arith.constant 0 : index
    %41 = vector.load %arg7[%c0_27, %c0_28] : memref<16x128xf32, #tpu.memory_space<vmem>>, vector<16x128xf32>
    tpu.vector_store %arg7[%c0_27, %c0_28], %40 {strides = array<i32>} : memref<16x128xf32, #tpu.memory_space<vmem>>, vector<16x128xf32>,
    return
  }
  func.func @transform_0(%arg0: i32) -> (i32, i32) {
    %c0_i32 = arith.constant 0 : i32
    %c0_i32_0 = arith.constant 0 : i32
    return %arg0, %c0_i32 : i32, i32
  }
  func.func @transform_1(%arg0: i32) -> (i32, i32) {
    %c0_i32 = arith.constant 0 : i32
    %c0_i32_0 = arith.constant 0 : i32
    return %arg0, %c0_i32 : i32, i32
  }
  func.func @transform_2(%arg0: i32) -> (i32, i32) {
    %c0_i32 = arith.constant 0 : i32
    %c0_i32_0 = arith.constant 0 : i32
    %c0_i32_1 = arith.constant 0 : i32
    return %c0_i32, %c0_i32_0 : i32, i32
  }
  func.func @transform_3(%arg0: i32) -> (i32, i32) {
    %c0_i32 = arith.constant 0 : i32
    %c0_i32_0 = arith.constant 0 : i32
    %c0_i32_1 = arith.constant 0 : i32
    return %c0_i32, %c0_i32_0 : i32, i32
  }
  func.func @transform_4(%arg0: i32) -> (i32, i32) {
    %c0_i32 = arith.constant 0 : i32
    %c0_i32_0 = arith.constant 0 : i32
    %c0_i32_1 = arith.constant 0 : i32
    return %c0_i32, %c0_i32_0 : i32, i32
  }
  func.func @transform_5(%arg0: i32) -> (i32, i32) {
    %c0_i32 = arith.constant 0 : i32
    %c0_i32_0 = arith.constant 0 : i32
    %c0_i32_1 = arith.constant 0 : i32
    return %c0_i32, %c0_i32_0 : i32, i32
  }
  func.func @transform_6(%arg0: i32) -> (i32, i32) {
    %c0_i32 = arith.constant 0 : i32
    %c0_i32_0 = arith.constant 0 : i32
    return %arg0, %c0_i32 : i32, i32
  }
}

</mosaic_0001>

<llo_original>
// kernel: gru_gating_unit.1
$region0: #{gru_gating_unit.1}
  #allocation0 [shape = 'u32[]', space=smem, size = 0x4, offset = 0x4, fixed_abs, tag = 'smem constant byte address 0x4 - core index']
  #allocation1 [shape = 'u32[144,128]{1,0:T(1,128)}', space=vmem, size = 0x12000, scoped, tag = 'internal scratch']
  %s0 = inlined_call_operand.vmem [shape: f32[16,128], index: 0, kind: input, shape index: {}]
  %s1 = inlined_call_operand.vmem [shape: f32[16,128], index: 1, kind: input, shape index: {}]
  %s2 = inlined_call_operand.hbm [shape: f32[128,384], index: 2, kind: input, shape index: {}]
  %s3 = inlined_call_operand.hbm [shape: f32[128,256], index: 3, kind: input, shape index: {}]
  %s4 = inlined_call_operand.hbm [shape: f32[128,128], index: 4, kind: input, shape index: {}]
  %s5 = inlined_call_operand.vmem [shape: f32[1,128], index: 5, kind: input, shape index: {}]
  %s6 = inlined_call_operand.vmem [shape: f32[16,128], index: 6, kind: output, shape index: {}]
  %s7 = sld [smem:[#allocation0]]
  $region46: #{gru_gating_unit.1} parent=0
    _
  %s9 = ssub.s32 1, %s7
  %s10 = scalar_select 0, %s9, %s7
  $region1: #{gru_gating_unit.1} parent=0
    #allocation2 [shape = 'u8[196608]{0}', space=vmem, size = 0x30000, scoped, tag = 'input window, operand 2, single buffered']
    #allocation3 [shape = 's32[1]{0}', space=sflag, size = 0x4, scoped, tag = 'scoped memory for gru_gating_unit.1']
    #allocation4 [shape = 'u8[131072]{0}', space=vmem, size = 0x20000, scoped, tag = 'input window, operand 3, single buffered']
    #allocation5 [shape = 's32[1]{0}', space=sflag, size = 0x4, scoped, tag = 'scoped memory for gru_gating_unit.1']
    #allocation6 [shape = 'u8[65536]{0}', space=vmem, size = 0x10000, scoped, tag = 'input window, operand 4, single buffered']
    %11 = vsyncpa [#allocation3], 0
    %12 = vsyncpa [#allocation5], 0
    // Predicated region
    $region2: #{gru_gating_unit.1} parent=1 // pred_check
      _
    $region3: #{gru_gating_unit.1} parent=1 // pred_check_branch
      %14 = sbr.rel (0) target = $region5
    $region4: #{gru_gating_unit.1} parent=1 // pred_region
      _
    $region5: #{gru_gating_unit.1} parent=1 // pred_fallthru
      _
    // Predicated region
    $region6: #{gru_gating_unit.1} parent=1 // pred_check
      _
    $region7: #{gru_gating_unit.1} parent=1 // pred_check_branch
      %16 = sbr.rel (0) target = $region9
    $region8: #{gru_gating_unit.1} parent=1 // pred_region
      _
    $region9: #{gru_gating_unit.1} parent=1 // pred_fallthru
      _
    // Predicated region
    $region10: #{gru_gating_unit.1} parent=1 // pred_check
      _
    $region11: #{gru_gating_unit.1} parent=1 // pred_check_branch
      %18 = sbr.rel (0) target = $region13
    $region12: #{gru_gating_unit.1} parent=1 // pred_region
      %s20 = ssub.s32 6144, 6144
      %21 = vsyncadd [#allocation3], %s20
      %s22 = sshll.u32 [#allocation2], 4
      %s23 = int_to_ptr.vmem [resolvable:$true] %s22
      %28 = dma.hbm_to_vmem [thread:$0]  %s2, 6144, %s23, [#allocation3], 384, 384, 24
    $region13: #{gru_gating_unit.1} parent=1 // pred_fallthru
      _
    // Predicated region
    $region14: #{gru_gating_unit.1} parent=1 // pred_check
      _
    $region15: #{gru_gating_unit.1} parent=1 // pred_check_branch
      %30 = sbr.rel (0) target = $region17
    $region16: #{gru_gating_unit.1} parent=1 // pred_region
      %s32 = ssub.s32 4096, 4096
      %33 = vsyncadd [#allocation5], %s32
      %s34 = sshll.u32 [#allocation4], 4
      %s35 = int_to_ptr.vmem [resolvable:$true] %s34
      %40 = dma.hbm_to_vmem [thread:$0]  %s3, 4096, %s35, [#allocation5], 256, 256, 16
    $region17: #{gru_gating_unit.1} parent=1 // pred_fallthru
      _
    // Predicated region
    $region18: #{gru_gating_unit.1} parent=1 // pred_check
      _
    $region19: #{gru_gating_unit.1} parent=1 // pred_check_branch
      %42 = sbr.rel (0) target = $region21
    $region20: #{gru_gating_unit.1} parent=1 // pred_region
      %s44 = ssub.s32 2048, 2048
      %45 = vsyncadd [#allocation5], %s44
      %s46 = sshll.u32 [#allocation6], 4
      %s47 = int_to_ptr.vmem [resolvable:$true] %s46
      %52 = dma.hbm_to_vmem [thread:$0]  %s4, 2048, %s47, [#allocation5], 128, 128, 8
    $region21: #{gru_gating_unit.1} parent=1 // pred_fallthru
      _
    // Predicated region
    $region22: #{gru_gating_unit.1} parent=1 // pred_check
      _
    $region23: #{gru_gating_unit.1} parent=1 // pred_check_branch
      %54 = sbr.rel (0) target = $region25
    $region24: #{gru_gating_unit.1} parent=1 // pred_region
      _
    $region25: #{gru_gating_unit.1} parent=1 // pred_fallthru
      _
    // Predicated region
    $region26: #{gru_gating_unit.1} parent=1 // pred_check
      _
    $region27: #{gru_gating_unit.1} parent=1 // pred_check_branch
      %56 = sbr.rel (0) target = $region29
    $region28: #{gru_gating_unit.1} parent=1 // pred_region
      %57 = dma.done [#allocation3], 6144
    $region29: #{gru_gating_unit.1} parent=1 // pred_fallthru
      _
    // Predicated region
    $region30: #{gru_gating_unit.1} parent=1 // pred_check
      _
    $region31: #{gru_gating_unit.1} parent=1 // pred_check_branch
      %59 = sbr.rel (0) target = $region33
    $region32: #{gru_gating_unit.1} parent=1 // pred_region
      %60 = dma.done [#allocation5], 4096
    $region33: #{gru_gating_unit.1} parent=1 // pred_fallthru
      _
    // Predicated region
    $region34: #{gru_gating_unit.1} parent=1 // pred_check
      _
    $region35: #{gru_gating_unit.1} parent=1 // pred_check_branch
      %62 = sbr.rel (0) target = $region37
    $region36: #{gru_gating_unit.1} parent=1 // pred_region
      %63 = dma.done [#allocation5], 2048
    $region37: #{gru_gating_unit.1} parent=1 // pred_fallthru
      _
    %v64 = vld [vmem:[%s0] sm:$0xff]
    %v65 = vld [vmem:[%s0 + $0x8] sm:$0xff]
    %v66 = vld [vmem:[%s1] sm:$0xff]
    %v67 = vld [vmem:[%s1 + $0x8] sm:$0xff]
    %v68 = vld [vmem:[%s5] sm:$0x1]
    %v69 = vld [vmem:[#allocation2 + $0x8] sm:$0xff]
    %v70 = vld [vmem:[#allocation2 + $0x20] sm:$0xff]
    %v71 = vld [vmem:[#allocation2 + $0x38] sm:$0xff]
    %v72 = vld [vmem:[#allocation2 + $0x50] sm:$0xff]
    %v73 = vld [vmem:[#allocation2 + $0x68] sm:$0xff]
    %v74 = vld [vmem:[#allocation2 + $0x80] sm:$0xff]
    %v75 = vld [vmem:[#allocation2 + $0x98] sm:$0xff]
    %v76 = vld [vmem:[#allocation2 + $0xb0] sm:$0xff]
    %v77 = vld [vmem:[#allocation2 + $0xc8] sm:$0xff]
    %v78 = vld [vmem:[#allocation2 + $0xe0] sm:$0xff]
    %v79 = vld [vmem:[#allocation2 + $0xf8] sm:$0xff]
    %v80 = vld [vmem:[#allocation2 + $0x110] sm:$0xff]
    %v81 = vld [vmem:[#allocation2 + $0x128] sm:$0xff]
    %v82 = vld [vmem:[#allocation2 + $0x140] sm:$0xff]
    %v83 = vld [vmem:[#allocation2 + $0x158] sm:$0xff]
    %v84 = vld [vmem:[#allocation2 + $0x170] sm:$0xff]
    %v85 = vld [vmem:[#allocation4 + $0x8] sm:$0xff]
    %v86 = vld [vmem:[#allocation4 + $0x18] sm:$0xff]
    %v87 = vld [vmem:[#allocation4 + $0x28] sm:$0xff]
    %v88 = vld [vmem:[#allocation4 + $0x38] sm:$0xff]
    %v89 = vld [vmem:[#allocation4 + $0x48] sm:$0xff]
    %v90 = vld [vmem:[#allocation4 + $0x58] sm:$0xff]
    %v91 = vld [vmem:[#allocation4 + $0x68] sm:$0xff]
    %v92 = vld [vmem:[#allocation4 + $0x78] sm:$0xff]
    %v93 = vld [vmem:[#allocation4 + $0x88] sm:$0xff]
    %v94 = vld [vmem:[#allocation4 + $0x98] sm:$0xff]
    %v95 = vld [vmem:[#allocation4 + $0xa8] sm:$0xff]
    %v96 = vld [vmem:[#allocation4 + $0xb8] sm:$0xff]
    %v97 = vld [vmem:[#allocation4 + $0xc8] sm:$0xff]
    %v98 = vld [vmem:[#allocation4 + $0xd8] sm:$0xff]
    %v99 = vld [vmem:[#allocation4 + $0xe8] sm:$0xff]
    %v100 = vld [vmem:[#allocation4 + $0xf8] sm:$0xff]
    %101 = vmatprep.subr.mxu0 0.0
    %102 = vmatpush1.msra.mxu0 %v85
    %103 = vmatprep.subr.mxu0 0.0
    %104 = vmatpush1.msra.mxu0 %v86
    %105 = vmatprep.subr.mxu0 0.0
    %106 = vmatpush1.msra.mxu0 %v87
    %107 = vmatprep.subr.mxu0 0.0
    %108 = vmatpush1.msra.mxu0 %v88
    %109 = vmatprep.subr.mxu0 0.0
    %110 = vmatpush1.msra.mxu0 %v89
    %111 = vmatprep.subr.mxu0 0.0
    %112 = vmatpush1.msra.mxu0 %v90
    %113 = vmatprep.subr.mxu0 0.0
    %114 = vmatpush1.msra.mxu0 %v91
    %115 = vmatprep.subr.mxu0 0.0
    %116 = vmatpush1.msra.mxu0 %v92
    %117 = vmatprep.subr.mxu0 0.0
    %118 = vmatpush1.msra.mxu0 %v93
    %119 = vmatprep.subr.mxu0 0.0
    %120 = vmatpush1.msra.mxu0 %v94
    %121 = vmatprep.subr.mxu0 0.0
    %122 = vmatpush1.msra.mxu0 %v95
    %123 = vmatprep.subr.mxu0 0.0
    %124 = vmatpush1.msra.mxu0 %v96
    %125 = vmatprep.subr.mxu0 0.0
    %126 = vmatpush1.msra.mxu0 %v97
    %127 = vmatprep.subr.mxu0 0.0
    %128 = vmatpush1.msra.mxu0 %v98
    %129 = vmatprep.subr.mxu0 0.0
    %130 = vmatpush1.msra.mxu0 %v99
    %131 = vmatprep.subr.mxu0 0.0
    %132 = vmatpush1.msra.mxu0 %v100
    %133 = vmatprep.subr.mxu0 0.0
    %134 = vmatpush1.msra.mxu0 0.0
    %135 = vmatprep.subr.mxu0 0.0
    %136 = vmatpush1.msra.mxu0 0.0
    %137 = vmatprep.subr.mxu0 0.0
    %138 = vmatpush1.msra.mxu0 0.0
    %139 = vmatprep.subr.mxu0 0.0
    %140 = vmatpush1.msra.mxu0 0.0
    %141 = vmatprep.subr.mxu0 0.0
    %142 = vmatpush1.msra.mxu0 0.0
    %143 = vmatprep.subr.mxu0 0.0
    %144 = vmatpush1.msra.mxu0 0.0
    %145 = vmatprep.subr.mxu0 0.0
    %146 = vmatpush1.msra.mxu0 0.0
    %147 = vmatprep.subr.mxu0 0.0
    %148 = vmatpush1.msra.mxu0 0.0
    %149 = vmatprep.subr.mxu0 0.0
    %150 = vmatpush1.msra.mxu0 0.0
    %151 = vmatprep.subr.mxu0 0.0
    %152 = vmatpush1.msra.mxu0 0.0
    %153 = vmatprep.subr.mxu0 0.0
    %154 = vmatpush1.msra.mxu0 0.0
    %155 = vmatprep.subr.mxu0 0.0
    %156 = vmatpush1.msra.mxu0 0.0
    %157 = vmatprep.subr.mxu0 0.0
    %158 = vmatpush1.msra.mxu0 0.0
    %159 = vmatprep.subr.mxu0 0.0
    %160 = vmatpush1.msra.mxu0 0.0
    %161 = vmatprep.subr.mxu0 0.0
    %162 = vmatpush1.msra.mxu0 0.0
    %163 = vmatprep.subr.mxu0 0.0
    %164 = vmatpush1.msra.mxu0 0.0
    %165 = vmatprep.mubr.f32.mxu0 0.0
    %166 = vmatmul.mubr.f32.gmra.mrb[0].mxu0 %v64
    %v167 = vpop.f32.mrb[0].mxu0
    %v168 = vadd.f32 0.0, %v167
    %v169 = vpop.f32.mrb[0].mxu0
    %170 = vmatprep.mubr.f32.mxu0 0.0
    %171 = vmatmul.mubr.f32.gmra.mrb[0].mxu0 %v65
    %v172 = vpop.f32.mrb[0].mxu0
    %v173 = vadd.f32 0.0, %v172
    %v174 = vpop.f32.mrb[0].mxu0
    %175 = vdwg.mxu0
    %176 = vmatprep.subr.mxu0 0.0
    %177 = vmatpush1.msra.mxu0 %v69
    %178 = vmatprep.subr.mxu0 0.0
    %179 = vmatpush1.msra.mxu0 %v70
    %180 = vmatprep.subr.mxu0 0.0
    %181 = vmatpush1.msra.mxu0 %v71
    %182 = vmatprep.subr.mxu0 0.0
    %183 = vmatpush1.msra.mxu0 %v72
    %184 = vmatprep.subr.mxu0 0.0
    %185 = vmatpush1.msra.mxu0 %v73
    %186 = vmatprep.subr.mxu0 0.0
    %187 = vmatpush1.msra.mxu0 %v74
    %188 = vmatprep.subr.mxu0 0.0
    %189 = vmatpush1.msra.mxu0 %v75
    %190 = vmatprep.subr.mxu0 0.0
    %191 = vmatpush1.msra.mxu0 %v76
    %192 = vmatprep.subr.mxu0 0.0
    %193 = vmatpush1.msra.mxu0 %v77
    %194 = vmatprep.subr.mxu0 0.0
    %195 = vmatpush1.msra.mxu0 %v78
    %196 = vmatprep.subr.mxu0 0.0
    %197 = vmatpush1.msra.mxu0 %v79
    %198 = vmatprep.subr.mxu0 0.0
    %199 = vmatpush1.msra.mxu0 %v80
    %200 = vmatprep.subr.mxu0 0.0
    %201 = vmatpush1.msra.mxu0 %v81
    %202 = vmatprep.subr.mxu0 0.0
    %203 = vmatpush1.msra.mxu0 %v82
    %204 = vmatprep.subr.mxu0 0.0
    %205 = vmatpush1.msra.mxu0 %v83
    %206 = vmatprep.subr.mxu0 0.0
    %207 = vmatpush1.msra.mxu0 %v84
    %208 = vmatprep.subr.mxu0 0.0
    %209 = vmatpush1.msra.mxu0 0.0
    %210 = vmatprep.subr.mxu0 0.0
    %211 = vmatpush1.msra.mxu0 0.0
    %212 = vmatprep.subr.mxu0 0.0
    %213 = vmatpush1.msra.mxu0 0.0
    %214 = vmatprep.subr.mxu0 0.0
    %215 = vmatpush1.msra.mxu0 0.0
    %216 = vmatprep.subr.mxu0 0.0
    %217 = vmatpush1.msra.mxu0 0.0
    %218 = vmatprep.subr.mxu0 0.0
    %219 = vmatpush1.msra.mxu0 0.0
    %220 = vmatprep.subr.mxu0 0.0
    %221 = vmatpush1.msra.mxu0 0.0
    %222 = vmatprep.subr.mxu0 0.0
    %223 = vmatpush1.msra.mxu0 0.0
    %224 = vmatprep.subr.mxu0 0.0
    %225 = vmatpush1.msra.mxu0 0.0
    %226 = vmatprep.subr.mxu0 0.0
    %227 = vmatpush1.msra.mxu0 0.0
    %228 = vmatprep.subr.mxu0 0.0
    %229 = vmatpush1.msra.mxu0 0.0
    %230 = vmatprep.subr.mxu0 0.0
    %231 = vmatpush1.msra.mxu0 0.0
    %232 = vmatprep.subr.mxu0 0.0
    %233 = vmatpush1.msra.mxu0 0.0
    %234 = vmatprep.subr.mxu0 0.0
    %235 = vmatpush1.msra.mxu0 0.0
    %236 = vmatprep.subr.mxu0 0.0
    %237 = vmatpush1.msra.mxu0 0.0
    %238 = vmatprep.subr.mxu0 0.0
    %239 = vmatpush1.msra.mxu0 0.0
    %240 = vmatprep.mubr.f32.mxu0 0.0
    %241 = vmatmul.mubr.f32.gmra.mrb[0].mxu0 %v66
    %v242 = vpop.f32.mrb[0].mxu0
    %v243 = vadd.f32 %v168, %v242
    %v244 = vpop.f32.mrb[0].mxu0
    %245 = vmatprep.mubr.f32.mxu0 0.0
    %246 = vmatmul.mubr.f32.gmra.mrb[0].mxu0 %v67
    %v247 = vpop.f32.mrb[0].mxu0
    %v248 = vadd.f32 %v173, %v247
    %v249 = vpop.f32.mrb[0].mxu0
    %250 = vdwg.mxu0
    %v252 = vlaneseq
    %v253 = vshrl.u32 %v252, 7
    %v254 = vsub.s32 0, %v253
    %v255 = vrot.slane %v68, %v254
    %v257 = vsub.f32 %v243, %v255
    %v258 = vsub.f32 %v248, %v255
    %v259 = vmul.f32 %v257, 0.5
    %v260 = vmul.f32 %v258, 0.5
    %v261 = vtanh.pop %v259
    %v262 = vtanh.pop %v260
    %v263 = vmul.f32 %v261, 0.5
    %v264 = vmul.f32 %v262, 0.5
    %v265 = vadd.f32 %v263, 0.5
    %v266 = vadd.f32 %v264, 0.5
    %v267 = vsub.f32 1.0, %v265
    %v268 = vsub.f32 1.0, %v266
    %v269 = vmul.f32 %v267, %v64
    %v270 = vmul.f32 %v268, %v65
    %v271 = vld [vmem:[#allocation2] sm:$0xff]
    %v272 = vld [vmem:[#allocation2 + $0x18] sm:$0xff]
    %v273 = vld [vmem:[#allocation2 + $0x30] sm:$0xff]
    %v274 = vld [vmem:[#allocation2 + $0x48] sm:$0xff]
    %v275 = vld [vmem:[#allocation2 + $0x60] sm:$0xff]
    %v276 = vld [vmem:[#allocation2 + $0x78] sm:$0xff]
    %v277 = vld [vmem:[#allocation2 + $0x90] sm:$0xff]
    %v278 = vld [vmem:[#allocation2 + $0xa8] sm:$0xff]
    %v279 = vld [vmem:[#allocation2 + $0xc0] sm:$0xff]
    %v280 = vld [vmem:[#allocation2 + $0xd8] sm:$0xff]
    %v281 = vld [vmem:[#allocation2 + $0xf0] sm:$0xff]
    %v282 = vld [vmem:[#allocation2 + $0x108] sm:$0xff]
    %v283 = vld [vmem:[#allocation2 + $0x120] sm:$0xff]
    %v284 = vld [vmem:[#allocation2 + $0x138] sm:$0xff]
    %v285 = vld [vmem:[#allocation2 + $0x150] sm:$0xff]
    %v286 = vld [vmem:[#allocation2 + $0x168] sm:$0xff]
    %v287 = vld [vmem:[#allocation4] sm:$0xff]
    %v288 = vld [vmem:[#allocation4 + $0x10] sm:$0xff]
    %v289 = vld [vmem:[#allocation4 + $0x20] sm:$0xff]
    %v290 = vld [vmem:[#allocation4 + $0x30] sm:$0xff]
    %v291 = vld [vmem:[#allocation4 + $0x40] sm:$0xff]
    %v292 = vld [vmem:[#allocation4 + $0x50] sm:$0xff]
    %v293 = vld [vmem:[#allocation4 + $0x60] sm:$0xff]
    %v294 = vld [vmem:[#allocation4 + $0x70] sm:$0xff]
    %v295 = vld [vmem:[#allocation4 + $0x80] sm:$0xff]
    %v296 = vld [vmem:[#allocation4 + $0x90] sm:$0xff]
    %v297 = vld [vmem:[#allocation4 + $0xa0] sm:$0xff]
    %v298 = vld [vmem:[#allocation4 + $0xb0] sm:$0xff]
    %v299 = vld [vmem:[#allocation4 + $0xc0] sm:$0xff]
    %v300 = vld [vmem:[#allocation4 + $0xd0] sm:$0xff]
    %v301 = vld [vmem:[#allocation4 + $0xe0] sm:$0xff]
    %v302 = vld [vmem:[#allocation4 + $0xf0] sm:$0xff]
    %303 = vmatprep.subr.mxu0 0.0
    %304 = vmatpush1.msra.mxu0 %v287
    %305 = vmatprep.subr.mxu0 0.0
    %306 = vmatpush1.msra.mxu0 %v288
    %307 = vmatprep.subr.mxu0 0.0
    %308 = vmatpush1.msra.mxu0 %v289
    %309 = vmatprep.subr.mxu0 0.0
    %310 = vmatpush1.msra.mxu0 %v290
    %311 = vmatprep.subr.mxu0 0.0
    %312 = vmatpush1.msra.mxu0 %v291
    %313 = vmatprep.subr.mxu0 0.0
    %314 = vmatpush1.msra.mxu0 %v292
    %315 = vmatprep.subr.mxu0 0.0
    %316 = vmatpush1.msra.mxu0 %v293
    %317 = vmatprep.subr.mxu0 0.0
    %318 = vmatpush1.msra.mxu0 %v294
    %319 = vmatprep.subr.mxu0 0.0
    %320 = vmatpush1.msra.mxu0 %v295
    %321 = vmatprep.subr.mxu0 0.0
    %322 = vmatpush1.msra.mxu0 %v296
    %323 = vmatprep.subr.mxu0 0.0
    %324 = vmatpush1.msra.mxu0 %v297
    %325 = vmatprep.subr.mxu0 0.0
    %326 = vmatpush1.msra.mxu0 %v298
    %327 = vmatprep.subr.mxu0 0.0
    %328 = vmatpush1.msra.mxu0 %v299
    %329 = vmatprep.subr.mxu0 0.0
    %330 = vmatpush1.msra.mxu0 %v300
    %331 = vmatprep.subr.mxu0 0.0
    %332 = vmatpush1.msra.mxu0 %v301
    %333 = vmatprep.subr.mxu0 0.0
    %334 = vmatpush1.msra.mxu0 %v302
    %335 = vmatprep.subr.mxu0 0.0
    %336 = vmatpush1.msra.mxu0 0.0
    %337 = vmatprep.subr.mxu0 0.0
    %338 = vmatpush1.msra.mxu0 0.0
    %339 = vmatprep.subr.mxu0 0.0
    %340 = vmatpush1.msra.mxu0 0.0
    %341 = vmatprep.subr.mxu0 0.0
    %342 = vmatpush1.msra.mxu0 0.0
    %343 = vmatprep.subr.mxu0 0.0
    %344 = vmatpush1.msra.mxu0 0.0
    %345 = vmatprep.subr.mxu0 0.0
    %346 = vmatpush1.msra.mxu0 0.0
    %347 = vmatprep.subr.mxu0 0.0
    %348 = vmatpush1.msra.mxu0 0.0
    %349 = vmatprep.subr.mxu0 0.0
    %350 = vmatpush1.msra.mxu0 0.0
    %351 = vmatprep.subr.mxu0 0.0
    %352 = vmatpush1.msra.mxu0 0.0
    %353 = vmatprep.subr.mxu0 0.0
    %354 = vmatpush1.msra.mxu0 0.0
    %355 = vmatprep.subr.mxu0 0.0
    %356 = vmatpush1.msra.mxu0 0.0
    %357 = vmatprep.subr.mxu0 0.0
    %358 = vmatpush1.msra.mxu0 0.0
    %359 = vmatprep.subr.mxu0 0.0
    %360 = vmatpush1.msra.mxu0 0.0
    %361 = vmatprep.subr.mxu0 0.0
    %362 = vmatpush1.msra.mxu0 0.0
    %363 = vmatprep.subr.mxu0 0.0
    %364 = vmatpush1.msra.mxu0 0.0
    %365 = vmatprep.subr.mxu0 0.0
    %366 = vmatpush1.msra.mxu0 0.0
    %367 = vmatprep.mubr.f32.mxu0 0.0
    %368 = vmatmul.mubr.f32.gmra.mrb[0].mxu0 %v64
    %v369 = vpop.f32.mrb[0].mxu0
    %v370 = vadd.f32 0.0, %v369
    %v371 = vpop.f32.mrb[0].mxu0
    %372 = vmatprep.mubr.f32.mxu0 0.0
    %373 = vmatmul.mubr.f32.gmra.mrb[0].mxu0 %v65
    %v374 = vpop.f32.mrb[0].mxu0
    %v375 = vadd.f32 0.0, %v374
    %v376 = vpop.f32.mrb[0].mxu0
    %377 = vdwg.mxu0
    %378 = vmatprep.subr.mxu0 0.0
    %379 = vmatpush1.msra.mxu0 %v271
    %380 = vmatprep.subr.mxu0 0.0
    %381 = vmatpush1.msra.mxu0 %v272
    %382 = vmatprep.subr.mxu0 0.0
    %383 = vmatpush1.msra.mxu0 %v273
    %384 = vmatprep.subr.mxu0 0.0
    %385 = vmatpush1.msra.mxu0 %v274
    %386 = vmatprep.subr.mxu0 0.0
    %387 = vmatpush1.msra.mxu0 %v275
    %388 = vmatprep.subr.mxu0 0.0
    %389 = vmatpush1.msra.mxu0 %v276
    %390 = vmatprep.subr.mxu0 0.0
    %391 = vmatpush1.msra.mxu0 %v277
    %392 = vmatprep.subr.mxu0 0.0
    %393 = vmatpush1.msra.mxu0 %v278
    %394 = vmatprep.subr.mxu0 0.0
    %395 = vmatpush1.msra.mxu0 %v279
    %396 = vmatprep.subr.mxu0 0.0
    %397 = vmatpush1.msra.mxu0 %v280
    %398 = vmatprep.subr.mxu0 0.0
    %399 = vmatpush1.msra.mxu0 %v281
    %400 = vmatprep.subr.mxu0 0.0
    %401 = vmatpush1.msra.mxu0 %v282
    %402 = vmatprep.subr.mxu0 0.0
    %403 = vmatpush1.msra.mxu0 %v283
    %404 = vmatprep.subr.mxu0 0.0
    %405 = vmatpush1.msra.mxu0 %v284
    %406 = vmatprep.subr.mxu0 0.0
    %407 = vmatpush1.msra.mxu0 %v285
    %408 = vmatprep.subr.mxu0 0.0
    %409 = vmatpush1.msra.mxu0 %v286
    %410 = vmatprep.subr.mxu0 0.0
    %411 = vmatpush1.msra.mxu0 0.0
    %412 = vmatprep.subr.mxu0 0.0
    %413 = vmatpush1.msra.mxu0 0.0
    %414 = vmatprep.subr.mxu0 0.0
    %415 = vmatpush1.msra.mxu0 0.0
    %416 = vmatprep.subr.mxu0 0.0
    %417 = vmatpush1.msra.mxu0 0.0
    %418 = vmatprep.subr.mxu0 0.0
    %419 = vmatpush1.msra.mxu0 0.0
    %420 = vmatprep.subr.mxu0 0.0
    %421 = vmatpush1.msra.mxu0 0.0
    %422 = vmatprep.subr.mxu0 0.0
    %423 = vmatpush1.msra.mxu0 0.0
    %424 = vmatprep.subr.mxu0 0.0
    %425 = vmatpush1.msra.mxu0 0.0
    %426 = vmatprep.subr.mxu0 0.0
    %427 = vmatpush1.msra.mxu0 0.0
    %428 = vmatprep.subr.mxu0 0.0
    %429 = vmatpush1.msra.mxu0 0.0
    %430 = vmatprep.subr.mxu0 0.0
    %431 = vmatpush1.msra.mxu0 0.0
    %432 = vmatprep.subr.mxu0 0.0
    %433 = vmatpush1.msra.mxu0 0.0
    %434 = vmatprep.subr.mxu0 0.0
    %435 = vmatpush1.msra.mxu0 0.0
    %436 = vmatprep.subr.mxu0 0.0
    %437 = vmatpush1.msra.mxu0 0.0
    %438 = vmatprep.subr.mxu0 0.0
    %439 = vmatpush1.msra.mxu0 0.0
    %440 = vmatprep.subr.mxu0 0.0
    %441 = vmatpush1.msra.mxu0 0.0
    %442 = vmatprep.mubr.f32.mxu0 0.0
    %443 = vmatmul.mubr.f32.gmra.mrb[0].mxu0 %v66
    %v444 = vpop.f32.mrb[0].mxu0
    %v445 = vadd.f32 %v370, %v444
    %v446 = vpop.f32.mrb[0].mxu0
    %447 = vmatprep.mubr.f32.mxu0 0.0
    %448 = vmatmul.mubr.f32.gmra.mrb[0].mxu0 %v67
    %v449 = vpop.f32.mrb[0].mxu0
    %v450 = vadd.f32 %v375, %v449
    %v451 = vpop.f32.mrb[0].mxu0
    %452 = vdwg.mxu0
    %v453 = vmul.f32 %v445, 0.5
    %v454 = vmul.f32 %v450, 0.5
    %v455 = vtanh.pop %v453
    %v456 = vtanh.pop %v454
    %v457 = vmul.f32 %v455, 0.5
    %v458 = vmul.f32 %v456, 0.5
    %v459 = vadd.f32 %v457, 0.5
    %v460 = vadd.f32 %v458, 0.5
    %v461 = vmul.f32 %v459, %v64
    %v462 = vmul.f32 %v460, %v65
    %v463 = vld [vmem:[#allocation2 + $0x10] sm:$0xff]
    %v464 = vld [vmem:[#allocation2 + $0x28] sm:$0xff]
    %v465 = vld [vmem:[#allocation2 + $0x40] sm:$0xff]
    %v466 = vld [vmem:[#allocation2 + $0x58] sm:$0xff]
    %v467 = vld [vmem:[#allocation2 + $0x70] sm:$0xff]
    %v468 = vld [vmem:[#allocation2 + $0x88] sm:$0xff]
    %v469 = vld [vmem:[#allocation2 + $0xa0] sm:$0xff]
    %v470 = vld [vmem:[#allocation2 + $0xb8] sm:$0xff]
    %v471 = vld [vmem:[#allocation2 + $0xd0] sm:$0xff]
    %v472 = vld [vmem:[#allocation2 + $0xe8] sm:$0xff]
    %v473 = vld [vmem:[#allocation2 + $0x100] sm:$0xff]
    %v474 = vld [vmem:[#allocation2 + $0x118] sm:$0xff]
    %v475 = vld [vmem:[#allocation2 + $0x130] sm:$0xff]
    %v476 = vld [vmem:[#allocation2 + $0x148] sm:$0xff]
    %v477 = vld [vmem:[#allocation2 + $0x160] sm:$0xff]
    %v478 = vld [vmem:[#allocation2 + $0x178] sm:$0xff]
    %v479 = vld [vmem:[#allocation6] sm:$0xff]
    %v480 = vld [vmem:[#allocation6 + $0x8] sm:$0xff]
    %v481 = vld [vmem:[#allocation6 + $0x10] sm:$0xff]
    %v482 = vld [vmem:[#allocation6 + $0x18] sm:$0xff]
    %v483 = vld [vmem:[#allocation6 + $0x20] sm:$0xff]
    %v484 = vld [vmem:[#allocation6 + $0x28] sm:$0xff]
    %v485 = vld [vmem:[#allocation6 + $0x30] sm:$0xff]
    %v486 = vld [vmem:[#allocation6 + $0x38] sm:$0xff]
    %v487 = vld [vmem:[#allocation6 + $0x40] sm:$0xff]
    %v488 = vld [vmem:[#allocation6 + $0x48] sm:$0xff]
    %v489 = vld [vmem:[#allocation6 + $0x50] sm:$0xff]
    %v490 = vld [vmem:[#allocation6 + $0x58] sm:$0xff]
    %v491 = vld [vmem:[#allocation6 + $0x60] sm:$0xff]
    %v492 = vld [vmem:[#allocation6 + $0x68] sm:$0xff]
    %v493 = vld [vmem:[#allocation6 + $0x70] sm:$0xff]
    %v494 = vld [vmem:[#allocation6 + $0x78] sm:$0xff]
    %495 = vmatprep.subr.mxu0 0.0
    %496 = vmatpush1.msra.mxu0 %v479
    %497 = vmatprep.subr.mxu0 0.0
    %498 = vmatpush1.msra.mxu0 %v480
    %499 = vmatprep.subr.mxu0 0.0
    %500 = vmatpush1.msra.mxu0 %v481
    %501 = vmatprep.subr.mxu0 0.0
    %502 = vmatpush1.msra.mxu0 %v482
    %503 = vmatprep.subr.mxu0 0.0
    %504 = vmatpush1.msra.mxu0 %v483
    %505 = vmatprep.subr.mxu0 0.0
    %506 = vmatpush1.msra.mxu0 %v484
    %507 = vmatprep.subr.mxu0 0.0
    %508 = vmatpush1.msra.mxu0 %v485
    %509 = vmatprep.subr.mxu0 0.0
    %510 = vmatpush1.msra.mxu0 %v486
    %511 = vmatprep.subr.mxu0 0.0
    %512 = vmatpush1.msra.mxu0 %v487
    %513 = vmatprep.subr.mxu0 0.0
    %514 = vmatpush1.msra.mxu0 %v488
    %515 = vmatprep.subr.mxu0 0.0
    %516 = vmatpush1.msra.mxu0 %v489
    %517 = vmatprep.subr.mxu0 0.0
    %518 = vmatpush1.msra.mxu0 %v490
    %519 = vmatprep.subr.mxu0 0.0
    %520 = vmatpush1.msra.mxu0 %v491
    %521 = vmatprep.subr.mxu0 0.0
    %522 = vmatpush1.msra.mxu0 %v492
    %523 = vmatprep.subr.mxu0 0.0
    %524 = vmatpush1.msra.mxu0 %v493
    %525 = vmatprep.subr.mxu0 0.0
    %526 = vmatpush1.msra.mxu0 %v494
    %527 = vmatprep.subr.mxu0 0.0
    %528 = vmatpush1.msra.mxu0 0.0
    %529 = vmatprep.subr.mxu0 0.0
    %530 = vmatpush1.msra.mxu0 0.0
    %531 = vmatprep.subr.mxu0 0.0
    %532 = vmatpush1.msra.mxu0 0.0
    %533 = vmatprep.subr.mxu0 0.0
    %534 = vmatpush1.msra.mxu0 0.0
    %535 = vmatprep.subr.mxu0 0.0
    %536 = vmatpush1.msra.mxu0 0.0
    %537 = vmatprep.subr.mxu0 0.0
    %538 = vmatpush1.msra.mxu0 0.0
    %539 = vmatprep.subr.mxu0 0.0
    %540 = vmatpush1.msra.mxu0 0.0
    %541 = vmatprep.subr.mxu0 0.0
    %542 = vmatpush1.msra.mxu0 0.0
    %543 = vmatprep.subr.mxu0 0.0
    %544 = vmatpush1.msra.mxu0 0.0
    %545 = vmatprep.subr.mxu0 0.0
    %546 = vmatpush1.msra.mxu0 0.0
    %547 = vmatprep.subr.mxu0 0.0
    %548 = vmatpush1.msra.mxu0 0.0
    %549 = vmatprep.subr.mxu0 0.0
    %550 = vmatpush1.msra.mxu0 0.0
    %551 = vmatprep.subr.mxu0 0.0
    %552 = vmatpush1.msra.mxu0 0.0
    %553 = vmatprep.subr.mxu0 0.0
    %554 = vmatpush1.msra.mxu0 0.0
    %555 = vmatprep.subr.mxu0 0.0
    %556 = vmatpush1.msra.mxu0 0.0
    %557 = vmatprep.subr.mxu0 0.0
    %558 = vmatpush1.msra.mxu0 0.0
    %559 = vmatprep.mubr.f32.mxu0 0.0
    %560 = vmatmul.mubr.f32.gmra.mrb[0].mxu0 %v461
    %v561 = vpop.f32.mrb[0].mxu0
    %v562 = vadd.f32 0.0, %v561
    %v563 = vpop.f32.mrb[0].mxu0
    %564 = vmatprep.mubr.f32.mxu0 0.0
    %565 = vmatmul.mubr.f32.gmra.mrb[0].mxu0 %v462
    %v566 = vpop.f32.mrb[0].mxu0
    %v567 = vadd.f32 0.0, %v566
    %v568 = vpop.f32.mrb[0].mxu0
    %569 = vdwg.mxu0
    %570 = vmatprep.subr.mxu0 0.0
    %571 = vmatpush1.msra.mxu0 %v463
    %572 = vmatprep.subr.mxu0 0.0
    %573 = vmatpush1.msra.mxu0 %v464
    %574 = vmatprep.subr.mxu0 0.0
    %575 = vmatpush1.msra.mxu0 %v465
    %576 = vmatprep.subr.mxu0 0.0
    %577 = vmatpush1.msra.mxu0 %v466
    %578 = vmatprep.subr.mxu0 0.0
    %579 = vmatpush1.msra.mxu0 %v467
    %580 = vmatprep.subr.mxu0 0.0
    %581 = vmatpush1.msra.mxu0 %v468
    %582 = vmatprep.subr.mxu0 0.0
    %583 = vmatpush1.msra.mxu0 %v469
    %584 = vmatprep.subr.mxu0 0.0
    %585 = vmatpush1.msra.mxu0 %v470
    %586 = vmatprep.subr.mxu0 0.0
    %587 = vmatpush1.msra.mxu0 %v471
    %588 = vmatprep.subr.mxu0 0.0
    %589 = vmatpush1.msra.mxu0 %v472
    %590 = vmatprep.subr.mxu0 0.0
    %591 = vmatpush1.msra.mxu0 %v473
    %592 = vmatprep.subr.mxu0 0.0
    %593 = vmatpush1.msra.mxu0 %v474
    %594 = vmatprep.subr.mxu0 0.0
    %595 = vmatpush1.msra.mxu0 %v475
    %596 = vmatprep.subr.mxu0 0.0
    %597 = vmatpush1.msra.mxu0 %v476
    %598 = vmatprep.subr.mxu0 0.0
    %599 = vmatpush1.msra.mxu0 %v477
    %600 = vmatprep.subr.mxu0 0.0
    %601 = vmatpush1.msra.mxu0 %v478
    %602 = vmatprep.subr.mxu0 0.0
    %603 = vmatpush1.msra.mxu0 0.0
    %604 = vmatprep.subr.mxu0 0.0
    %605 = vmatpush1.msra.mxu0 0.0
    %606 = vmatprep.subr.mxu0 0.0
    %607 = vmatpush1.msra.mxu0 0.0
    %608 = vmatprep.subr.mxu0 0.0
    %609 = vmatpush1.msra.mxu0 0.0
    %610 = vmatprep.subr.mxu0 0.0
    %611 = vmatpush1.msra.mxu0 0.0
    %612 = vmatprep.subr.mxu0 0.0
    %613 = vmatpush1.msra.mxu0 0.0
    %614 = vmatprep.subr.mxu0 0.0
    %615 = vmatpush1.msra.mxu0 0.0
    %616 = vmatprep.subr.mxu0 0.0
    %617 = vmatpush1.msra.mxu0 0.0
    %618 = vmatprep.subr.mxu0 0.0
    %619 = vmatpush1.msra.mxu0 0.0
    %620 = vmatprep.subr.mxu0 0.0
    %621 = vmatpush1.msra.mxu0 0.0
    %622 = vmatprep.subr.mxu0 0.0
    %623 = vmatpush1.msra.mxu0 0.0
    %624 = vmatprep.subr.mxu0 0.0
    %625 = vmatpush1.msra.mxu0 0.0
    %626 = vmatprep.subr.mxu0 0.0
    %627 = vmatpush1.msra.mxu0 0.0
    %628 = vmatprep.subr.mxu0 0.0
    %629 = vmatpush1.msra.mxu0 0.0
    %630 = vmatprep.subr.mxu0 0.0
    %631 = vmatpush1.msra.mxu0 0.0
    %632 = vmatprep.subr.mxu0 0.0
    %633 = vmatpush1.msra.mxu0 0.0
    %634 = vmatprep.mubr.f32.mxu0 0.0
    %635 = vmatmul.mubr.f32.gmra.mrb[0].mxu0 %v66
    %v636 = vpop.f32.mrb[0].mxu0
    %v637 = vadd.f32 %v562, %v636
    %v638 = vpop.f32.mrb[0].mxu0
    %639 = vmatprep.mubr.f32.mxu0 0.0
    %640 = vmatmul.mubr.f32.gmra.mrb[0].mxu0 %v67
    %v641 = vpop.f32.mrb[0].mxu0
    %v642 = vadd.f32 %v567, %v641
    %v643 = vpop.f32.mrb[0].mxu0
    %644 = vdwg.mxu0
    %v645 = vtanh.pop %v637
    %v646 = vtanh.pop %v642
    %v647 = vmul.f32 %v265, %v645
    %v648 = vmul.f32 %v266, %v646
    %v649 = vadd.f32 %v269, %v647
    %v650 = vadd.f32 %v270, %v648
    %651 = vst [vmem:[%s6] sm:$0xff] %v649
    %652 = vst [vmem:[%s6 + $0x8] sm:$0xff] %v650
    // Predicated region
    $region38: #{gru_gating_unit.1} parent=1 // pred_check
      _
    $region39: #{gru_gating_unit.1} parent=1 // pred_check_branch
      %654 = sbr.rel (0) target = $region41
    $region40: #{gru_gating_unit.1} parent=1 // pred_region
      _
    $region41: #{gru_gating_unit.1} parent=1 // pred_fallthru
      _
    // Predicated region
    $region42: #{gru_gating_unit.1} parent=1 // pred_check
      _
    $region43: #{gru_gating_unit.1} parent=1 // pred_check_branch
      %656 = sbr.rel (0) target = $region45
    $region44: #{gru_gating_unit.1} parent=1 // pred_region
      _
    $region45: #{gru_gating_unit.1} parent=1 // pred_fallthru
      _
    %657 = vsyncpa [#allocation3], 1
    %658 = vsyncpa [#allocation5], 1

</llo_original>
